<compile_context>
chip_gen: v7x
topology: tpu7x:2x2x1
jax: 0.10.0
libtpu: 0.0.40
codegen_flags: <defaults>
</compile_context>

<pallas_src>
import functools

import jax
import jax.numpy as jnp
from jax import lax
from jax.experimental import pallas as pl
from jax.experimental.pallas import tpu as pltpu

_NEG_BIG = -1e30  # finite "-inf" for padded class columns (avoids -inf * 0 = NaN)


def classifier_kernel(x_ref, w_ref, b_ref, labels_ref, wt_ref,
                      logits_ref, argmax_ref, part_ref, *, exp_in_bf16):
    # x: (TB, H) f32/bf16 (pipelined tile), w: (H, Cp) bf16 (resident), b/wt: (1, Cp) f32
    # (resident), labels: (TB, 1) i32 (pipelined tile).
    x = x_ref[...]
    if x.dtype != jnp.bfloat16:
        x = x.astype(jnp.bfloat16)           # cast in-kernel: no extra wrapper HBM pass
    w = w_ref[...]
    b = b_ref[...]
    labels = labels_ref[...]
    wt = wt_ref[...]

    # logits = x @ W^T + bias. W was pre-transposed in the wrapper to (H, Cp): plain NN
    # contraction with C_pad on lanes (natural MXU layout), bf16 inputs, f32 accumulation.
    logits = lax.dot_general(
        x, w,
        dimension_numbers=(((1,), (0,)), ((), ())),
        preferred_element_type=jnp.float32) + b                      # (TB, Cp) f32
    logits_ref[...] = logits

    TB, CP = logits.shape
    col = lax.broadcasted_iota(jnp.int32, (TB, CP), 1)

    # argmax over classes (first-max index, matching torch.max tie-breaking).
    rowmax = jnp.max(logits, axis=1, keepdims=True)                  # (TB, 1)
    argmax_ref[...] = jnp.min(jnp.where(logits == rowmax, col, CP),
                              axis=1, keepdims=True).astype(jnp.int32)

    # Weighted cross-entropy partials for this tile:
    #   nll_i = logsumexp(logits_i) - logits_i[y_i] = lse(shifted_i) - shifted_i[y_i]
    # Padded batch rows carry label = -1 -> mask all-False -> zero weight -> no contribution.
    shifted = logits - rowmax                                        # (TB, Cp)
    sel = col == labels                                              # bool mask, no f32 one-hot
    picked = jnp.sum(jnp.where(sel, shifted, 0.0), axis=1, keepdims=True)   # (TB, 1)
    w_i = jnp.sum(jnp.where(sel, wt, 0.0), axis=1, keepdims=True)           # (TB, 1)
    if exp_in_bf16:
        # shifted <= 0, so bf16 exp only underflows already-negligible terms; sum stays f32.
        expv = jnp.exp(shifted.astype(jnp.bfloat16)).astype(jnp.float32)
    else:
        expv = jnp.exp(shifted)
    lse = jnp.log(jnp.sum(expv, axis=1, keepdims=True))              # (TB, 1)
    nll = lse - picked                                               # (TB, 1)

    tile_num = jnp.sum(w_i * nll)   # sum_i w[y_i] * nll_i  (this tile)
    tile_den = jnp.sum(w_i)         # sum_i w[y_i]          (this tile)
    # Pack both partial sums into one lane-dense (8, 128) block: row 0 = num, row 1 = den.
    row = lax.broadcasted_iota(jnp.int32, part_ref.shape, 0)
    part_ref[...] = jnp.where(row == 0, tile_num,
                              jnp.where(row == 1, tile_den, 0.0))


def _round_up(v, m):
    return pl.cdiv(v, m) * m


def _tiling_params(batch, hidden, c_pad):
    """Per-TPU-generation batch-tile size, VMEM limit and EUP-precision choice."""
    kind = jax.devices()[0].device_kind.lower()
    if "v5" in kind:
        # v5e: 4x128^2 MXU, single vst slot -> M=128 tiles, f32 exp (no bf16 EUP).
        base, budget, vmem_limit, exp_bf16 = 128, 28 << 20, 64 << 20, False
    elif "v6" in kind:
        # v6e: 2x256^2 MXU, 128 MiB physical VMEM -> larger batch tiles.
        base = 512 if c_pad <= 1024 else 256
        budget, vmem_limit, exp_bf16 = 64 << 20, 96 << 20, True
    else:
        # v7x (64 MiB VMEM) and unknown generations: conservative budget.
        base, budget, vmem_limit, exp_bf16 = 256, 36 << 20, 48 << 20, True

    def vmem_bytes(tb):
        # double-buffered x tile (worst case f32 in HBM) + resident bf16 W^T (single copy)
        # + double-buffered f32 logits tile + ~4 live (TB, Cp) f32 temps + small outputs.
        return (2 * tb * hidden * 4 + c_pad * hidden * 2
                + 2 * tb * c_pad * 4 + 4 * tb * c_pad * 4
                + 8 * c_pad + 16 * tb + 2 * 8 * 128 * 4)

    while base > 16 and vmem_bytes(base) > budget:
        base //= 2

    tile_b = min(base, _round_up(batch, 16))
    # Prefer >= 2 batch tiles so the "parallel" axis can shard across cores (megacore / 2 TCs).
    if batch > 16:
        tile_b = min(tile_b, max(16, _round_up(pl.cdiv(batch, 2), 16)))
    # exp-in-bf16 only pays when the contraction dim is small (EUP-bound regime).
    exp_bf16 = exp_bf16 and hidden <= 256
    return tile_b, vmem_limit, exp_bf16


@functools.partial(jax.jit, static_argnames=("tile_b", "vmem_limit", "exp_bf16"))
def _classifier_forward_impl(x, mood_weight, bias, labels, weight_table,
                             *, tile_b, vmem_limit, exp_bf16):
    B, H = x.shape
    C = mood_weight.shape[0]
    C_pad = _round_up(C, 128)
    B_pad = _round_up(B, tile_b)
    num_tiles = B_pad // tile_b

    # Grid-invariant operands: pad classes, pre-transpose weight to (H, C_pad), cast once.
    w_t = jnp.pad(mood_weight.astype(jnp.float32),
                  ((0, C_pad - C), (0, 0))).T.astype(jnp.bfloat16)          # (H, C_pad) bf16
    b_p = jnp.pad(bias.astype(jnp.float32), (0, C_pad - C),
                  constant_values=_NEG_BIG).reshape(1, C_pad)
    wt_p = jnp.pad(weight_table.astype(jnp.float32),
                   (0, C_pad - C)).reshape(1, C_pad)

    # Batch operands: pad only when needed, keep x in its native dtype (cast in-kernel).
    x_p = x if B_pad == B else jnp.pad(x, ((0, B_pad - B), (0, 0)))
    lbl = labels.astype(jnp.int32).reshape(B, 1)
    lbl_p = lbl if B_pad == B else jnp.pad(lbl, ((0, B_pad - B), (0, 0)),
                                           constant_values=-1)

    kernel = functools.partial(classifier_kernel, exp_in_bf16=exp_bf16)

    logits_p, argmax_p, part_p = pl.pallas_call(
        kernel,
        grid=(num_tiles,),
        out_shape=(
            jax.ShapeDtypeStruct((B_pad, C_pad), jnp.float32),        # logits
            jax.ShapeDtypeStruct((B_pad, 1), jnp.int32),              # argmax indices
            jax.ShapeDtypeStruct((num_tiles * 8, 128), jnp.float32),  # loss partials (num/den)
        ),
        in_specs=[
            pl.BlockSpec((tile_b, H), lambda i: (i, 0)),              # x tile (pipelined)
            pl.BlockSpec(memory_space=pltpu.MemorySpace.VMEM),        # W^T: resident, 1-buffered
            pl.BlockSpec(memory_space=pltpu.MemorySpace.VMEM),        # bias: resident
            pl.BlockSpec((tile_b, 1), lambda i: (i, 0)),              # labels tile (pipelined)
            pl.BlockSpec(memory_space=pltpu.MemorySpace.VMEM),        # class weights: resident
        ],
        out_specs=(
            pl.BlockSpec((tile_b, C_pad), lambda i: (i, 0)),          # logits tile (lane-dense)
            pl.BlockSpec((tile_b, 1), lambda i: (i, 0)),              # argmax tile
            pl.BlockSpec((8, 128), lambda i: (i, 0)),                 # per-tile loss partials
        ),
        compiler_params=pltpu.CompilerParams(
            dimension_semantics=("parallel",),
            vmem_limit_bytes=vmem_limit,
        ),
    )(x_p, w_t, b_p, lbl_p, wt_p)

    # Tiny final reduction over per-tile partials done in the wrapper (keeps grid parallel).
    part = part_p.reshape(num_tiles, 8, 128)
    loss = jnp.sum(part[:, 0, 0]) / jnp.sum(part[:, 1, 0])
    return loss, argmax_p[:B, 0], logits_p[:B, :C]


def classifier_forward(x, mood_weight, bias, labels, weight_table):
    """Pallas-backed equivalent of Classifier.forward(x) -> (loss, argmax, logits)."""
    B, H = x.shape
    C_pad = _round_up(mood_weight.shape[0], 128)
    tile_b, vmem_limit, exp_bf16 = _tiling_params(B, H, C_pad)
    return _classifier_forward_impl(x, mood_weight, bias, labels, weight_table,
                                    tile_b=tile_b, vmem_limit=vmem_limit,
                                    exp_bf16=exp_bf16)


if __name__ == "__main__":
    # Small config: mood_total (classes) = 16, hidden_size = 32, batch = 8.
    MOOD_TOTAL = 16
    HIDDEN = 32
    BATCH = 8

    key = jax.random.PRNGKey(0)
    k_x, k_w, k_b, k_lbl, k_wt = jax.random.split(key, 5)

    # Deterministic parameter init mimicking the module's __init__:
    #   mood_matrix.weight: xavier_uniform_ over (mood_total, hidden_size)
    xavier_limit = (6.0 / (MOOD_TOTAL + HIDDEN)) ** 0.5
    mood_weight = jax.random.uniform(
        k_w, (MOOD_TOTAL, HIDDEN), jnp.float32, -xavier_limit, xavier_limit)
    #   bias: uniform_(0, 1) over (mood_total,)
    bias = jax.random.uniform(k_b, (MOOD_TOTAL,), jnp.float32, 0.0, 1.0)
    #   CrossEntropyLoss class weights (weight_tabel): positive per-class weights
    weight_table = jax.random.uniform(k_wt, (MOOD_TOTAL,), jnp.float32, 0.5, 1.5)

    # Inputs: features x and labels (self.label in the module).
    x = jax.random.normal(k_x, (BATCH, HIDDEN), jnp.float32)
    labels = jax.random.randint(k_lbl, (BATCH,), 0, MOOD_TOTAL, jnp.int32)

    # TODO(synk): nn.Dropout is defined in __init__ but unused in forward(); omitted.
    loss, output, logits = classifier_forward(x, mood_weight, bias, labels, weight_table)
    jax.block_until_ready((loss, output, logits))

    print("KERNEL_OK")
</pallas_src>

<mosaic_0001>
module attributes {stable_mosaic.version = 11 : i64} {
  func.func @classifier_kernel(%arg0: i32, %arg1: memref<16x32xf32, #tpu.memory_space<vmem>>, %arg2: memref<32x128xbf16, #tpu.memory_space<vmem>>, %arg3: memref<1x128xf32, #tpu.memory_space<vmem>>, %arg4: memref<16x1xi32, #tpu.memory_space<vmem>>, %arg5: memref<1x128xf32, #tpu.memory_space<vmem>>, %arg6: memref<16x128xf32, #tpu.memory_space<vmem>>, %arg7: memref<16x1xi32, #tpu.memory_space<vmem>>, %arg8: memref<8x128xf32, #tpu.memory_space<vmem>>) attributes {dimension_semantics = [#tpu.dimension_semantics<parallel>], iteration_bounds = array<i64: 1>, scalar_prefetch = 0 : i64, scratch_operands = 0 : i64, tpu.core_type = #tpu.core_type<tc>, window_params = [{transform_indices = @transform_0, window_bounds = array<i64: 16, 32>}, {pipeline_mode = #tpu.pipeline_mode<synchronous>, transform_indices = @transform_1, window_bounds = array<i64: 32, 128>}, {pipeline_mode = #tpu.pipeline_mode<synchronous>, transform_indices = @transform_2, window_bounds = array<i64: 1, 128>}, {transform_indices = @transform_3, window_bounds = array<i64: 16, 1>}, {pipeline_mode = #tpu.pipeline_mode<synchronous>, transform_indices = @transform_4, window_bounds = array<i64: 1, 128>}, {transform_indices = @transform_5, window_bounds = array<i64: 16, 128>}, {transform_indices = @transform_6, window_bounds = array<i64: 16, 1>}, {transform_indices = @transform_7, window_bounds = array<i64: 8, 128>}]} {
    %c0 = arith.constant 0 : index
    %c0_0 = arith.constant 0 : index
    %0 = vector.load %arg1[%c0, %c0_0] : memref<16x32xf32, #tpu.memory_space<vmem>>, vector<16x32xf32>
    %1 = arith.truncf %0 : vector<16x32xf32> to vector<16x32xbf16>
    %c0_1 = arith.constant 0 : index
    %c0_2 = arith.constant 0 : index
    %2 = vector.load %arg2[%c0_1, %c0_2] : memref<32x128xbf16, #tpu.memory_space<vmem>>, vector<32x128xbf16>
    %c0_3 = arith.constant 0 : index
    %c0_4 = arith.constant 0 : index
    %3 = vector.load %arg3[%c0_3, %c0_4] : memref<1x128xf32, #tpu.memory_space<vmem>>, vector<1x128xf32>
    %c0_5 = arith.constant 0 : index
    %c0_6 = arith.constant 0 : index
    %4 = vector.load %arg4[%c0_5, %c0_6] : memref<16x1xi32, #tpu.memory_space<vmem>>, vector<16x1xi32>
    %c0_7 = arith.constant 0 : index
    %c0_8 = arith.constant 0 : index
    %5 = vector.load %arg5[%c0_7, %c0_8] : memref<1x128xf32, #tpu.memory_space<vmem>>, vector<1x128xf32>
    %cst = arith.constant dense<0.000000e+00> : vector<16x128xf32>
    %6 = tpu.matmul %1, %2, %cst {dimension_numbers = #tpu.dot_dimension_numbers<[1], [0], [0], [1], [0, 0, 1, 1], [], []>} : vector<16x32xbf16>, vector<32x128xbf16>, vector<16x128xf32> -> vector<16x128xf32>
    %7 = vector.broadcast %3 : vector<1x128xf32> to vector<16x128xf32>
    %8 = arith.addf %6, %7 : vector<16x128xf32>
    %c0_9 = arith.constant 0 : index
    %c0_10 = arith.constant 0 : index
    %9 = vector.load %arg6[%c0_9, %c0_10] : memref<16x128xf32, #tpu.memory_space<vmem>>, vector<16x128xf32>
    tpu.vector_store %arg6[%c0_9, %c0_10], %8 {strides = array<i32>} : memref<16x128xf32, #tpu.memory_space<vmem>>, vector<16x128xf32>,
    %10 = tpu.iota {dimensions = array<i32: 1>} : vector<16x128xi32>
    %cst_11 = arith.constant dense<0xFF800000> : vector<16xf32>
    %11 = vector.multi_reduction <maximumf>, %8, %cst_11 [1] : vector<16x128xf32> to vector<16xf32>
    %12 = vector.shape_cast %11 : vector<16xf32> to vector<16x1xf32>
    %13 = vector.broadcast %12 : vector<16x1xf32> to vector<16x128xf32>
    %14 = arith.cmpf oeq, %8, %13 : vector<16x128xf32>
    %c128_i32 = arith.constant 128 : i32
    %15 = vector.broadcast %c128_i32 : i32 to vector<16x128xi32>
    %16 = arith.select %14, %10, %15 : vector<16x128xi1>, vector<16x128xi32>
    %cst_12 = arith.constant dense<2147483647> : vector<16xi32>
    %17 = vector.multi_reduction <minsi>, %16, %cst_12 [1] : vector<16x128xi32> to vector<16xi32>
    %18 = vector.shape_cast %17 : vector<16xi32> to vector<16x1xi32>
    %c0_13 = arith.constant 0 : index
    %c0_14 = arith.constant 0 : index
    %19 = vector.load %arg7[%c0_13, %c0_14] : memref<16x1xi32, #tpu.memory_space<vmem>>, vector<16x1xi32>
    tpu.vector_store %arg7[%c0_13, %c0_14], %18 {strides = array<i32>} : memref<16x1xi32, #tpu.memory_space<vmem>>, vector<16x1xi32>,
    %20 = vector.broadcast %12 : vector<16x1xf32> to vector<16x128xf32>
    %21 = arith.subf %8, %20 : vector<16x128xf32>
    %22 = vector.broadcast %4 : vector<16x1xi32> to vector<16x128xi32>
    %23 = arith.cmpi eq, %10, %22 : vector<16x128xi32>
    %cst_15 = arith.constant 0.000000e+00 : f32
    %24 = vector.broadcast %cst_15 : f32 to vector<16x128xf32>
    %25 = arith.select %23, %21, %24 : vector<16x128xi1>, vector<16x128xf32>
    %cst_16 = arith.constant dense<0.000000e+00> : vector<16xf32>
    %26 = vector.multi_reduction <add>, %25, %cst_16 [1] : vector<16x128xf32> to vector<16xf32>
    %27 = vector.shape_cast %26 : vector<16xf32> to vector<16x1xf32>
    %cst_17 = arith.constant 0.000000e+00 : f32
    %28 = vector.shape_cast %5 : vector<1x128xf32> to vector<1x128xf32>
    %29 = vector.broadcast %28 : vector<1x128xf32> to vector<16x128xf32>
    %30 = vector.broadcast %cst_17 : f32 to vector<16x128xf32>
    %31 = arith.select %23, %29, %30 : vector<16x128xi1>, vector<16x128xf32>
    %cst_18 = arith.constant dense<0.000000e+00> : vector<16xf32>
    %32 = vector.multi_reduction <add>, %31, %cst_18 [1] : vector<16x128xf32> to vector<16xf32>
    %33 = vector.shape_cast %32 : vector<16xf32> to vector<16x1xf32>
    %34 = arith.truncf %21 : vector<16x128xf32> to vector<16x128xbf16>
    %35 = math.exp %34 : vector<16x128xbf16>
    %36 = arith.extf %35 : vector<16x128xbf16> to vector<16x128xf32>
    %cst_19 = arith.constant dense<0.000000e+00> : vector<16xf32>
    %37 = vector.multi_reduction <add>, %36, %cst_19 [1] : vector<16x128xf32> to vector<16xf32>
    %38 = vector.shape_cast %37 : vector<16xf32> to vector<16x1xf32>
    %39 = math.log %38 : vector<16x1xf32>
    %40 = arith.subf %39, %27 : vector<16x1xf32>
    %41 = arith.mulf %33, %40 : vector<16x1xf32>
    %42 = vector.shape_cast %41 : vector<16x1xf32> to vector<1x16x1xf32>
    %cst_20 = arith.constant dense<0.000000e+00> : vector<1xf32>
    %43 = vector.multi_reduction <add>, %42, %cst_20 [1, 2] : vector<1x16x1xf32> to vector<1xf32>
    %44 = vector.shape_cast %43 : vector<1xf32> to vector<1x1x1xf32>
    %45 = vector.extract %44[0, 0, 0] : f32 from vector<1x1x1xf32>
    %46 = vector.shape_cast %33 : vector<16x1xf32> to vector<1x16x1xf32>
    %cst_21 = arith.constant dense<0.000000e+00> : vector<1xf32>
    %47 = vector.multi_reduction <add>, %46, %cst_21 [1, 2] : vector<1x16x1xf32> to vector<1xf32>
    %48 = vector.shape_cast %47 : vector<1xf32> to vector<1x1x1xf32>
    %49 = vector.extract %48[0, 0, 0] : f32 from vector<1x1x1xf32>
    %50 = tpu.iota {dimensions = array<i32: 0>} : vector<8x128xi32>
    %c0_i32 = arith.constant 0 : i32
    %51 = vector.broadcast %c0_i32 : i32 to vector<8x128xi32>
    %52 = arith.cmpi eq, %50, %51 : vector<8x128xi32>
    %c1_i32 = arith.constant 1 : i32
    %53 = vector.broadcast %c1_i32 : i32 to vector<8x128xi32>
    %54 = arith.cmpi eq, %50, %53 : vector<8x128xi32>
    %cst_22 = arith.constant 0.000000e+00 : f32
    %55 = vector.broadcast %49 : f32 to vector<8x128xf32>
    %56 = vector.broadcast %cst_22 : f32 to vector<8x128xf32>
    %57 = arith.select %54, %55, %56 : vector<8x128xi1>, vector<8x128xf32>
    %58 = vector.broadcast %45 : f32 to vector<8x128xf32>
    %59 = arith.select %52, %58, %57 : vector<8x128xi1>, vector<8x128xf32>
    %c0_23 = arith.constant 0 : index
    %c0_24 = arith.constant 0 : index
    %60 = vector.load %arg8[%c0_23, %c0_24] : memref<8x128xf32, #tpu.memory_space<vmem>>, vector<8x128xf32>
    tpu.vector_store %arg8[%c0_23, %c0_24], %59 {strides = array<i32>} : memref<8x128xf32, #tpu.memory_space<vmem>>, vector<8x128xf32>,
    return
  }
  func.func @transform_0(%arg0: i32) -> (i32, i32) {
    %c0_i32 = arith.constant 0 : i32
    %c0_i32_0 = arith.constant 0 : i32
    return %arg0, %c0_i32 : i32, i32
  }
  func.func @transform_1(%arg0: i32) -> (i32, i32) {
    %c0_i32 = arith.constant 0 : i32
    %c0_i32_0 = arith.constant 0 : i32
    %c0_i32_1 = arith.constant 0 : i32
    return %c0_i32, %c0_i32_0 : i32, i32
  }
  func.func @transform_2(%arg0: i32) -> (i32, i32) {
    %c0_i32 = arith.constant 0 : i32
    %c0_i32_0 = arith.constant 0 : i32
    %c0_i32_1 = arith.constant 0 : i32
    return %c0_i32, %c0_i32_0 : i32, i32
  }
  func.func @transform_3(%arg0: i32) -> (i32, i32) {
    %c0_i32 = arith.constant 0 : i32
    %c0_i32_0 = arith.constant 0 : i32
    return %arg0, %c0_i32 : i32, i32
  }
  func.func @transform_4(%arg0: i32) -> (i32, i32) {
    %c0_i32 = arith.constant 0 : i32
    %c0_i32_0 = arith.constant 0 : i32
    %c0_i32_1 = arith.constant 0 : i32
    return %c0_i32, %c0_i32_0 : i32, i32
  }
  func.func @transform_5(%arg0: i32) -> (i32, i32) {
    %c0_i32 = arith.constant 0 : i32
    %c0_i32_0 = arith.constant 0 : i32
    return %arg0, %c0_i32 : i32, i32
  }
  func.func @transform_6(%arg0: i32) -> (i32, i32) {
    %c0_i32 = arith.constant 0 : i32
    %c0_i32_0 = arith.constant 0 : i32
    return %arg0, %c0_i32 : i32, i32
  }
  func.func @transform_7(%arg0: i32) -> (i32, i32) {
    %c0_i32 = arith.constant 0 : i32
    %c0_i32_0 = arith.constant 0 : i32
    return %arg0, %c0_i32 : i32, i32
  }
}

</mosaic_0001>

<llo_original>
// kernel: _classifier_forward_impl.1
$region0: #{_classifier_forward_impl.1}
  #allocation0 [shape = 'u32[]', space=smem, size = 0x4, offset = 0x4, fixed_abs, tag = 'smem constant byte address 0x4 - core index']
  #allocation1 [shape = 'u32[144,128]{1,0:T(1,128)}', space=vmem, size = 0x12000, scoped, tag = 'internal scratch']
  %s0 = inlined_call_operand.vmem [shape: f32[16,32], index: 0, kind: input, shape index: {}]
  %s1 = inlined_call_operand.vmem [shape: bf16[32,128], index: 1, kind: input, shape index: {}]
  %s2 = inlined_call_operand.vmem [shape: f32[1,128], index: 2, kind: input, shape index: {}]
  %s3 = inlined_call_operand.vmem [shape: s32[16,1], index: 3, kind: input, shape index: {}]
  %s4 = inlined_call_operand.vmem [shape: f32[1,128], index: 4, kind: input, shape index: {}]
  %s5 = inlined_call_operand.vmem [shape: f32[16,128], index: 5, kind: output, shape index: {0}]
  %s6 = inlined_call_operand.vmem [shape: s32[16,1], index: 6, kind: output, shape index: {1}]
  %s7 = inlined_call_operand.vmem [shape: f32[8,128], index: 7, kind: output, shape index: {2}]
  %8 = xla_tuple %s5, %s6, %s7
  %s9 = sld [smem:[#allocation0]]
  $region46: #{_classifier_forward_impl.1} parent=0
    _
  %s11 = ssub.s32 1, %s9
  %s12 = scalar_select 0, %s11, %s9
  // Predicated region
  $region2: #{_classifier_forward_impl.1} parent=0 // pred_check
    _
  $region3: #{_classifier_forward_impl.1} parent=0 // pred_check_branch
    %14 = sbr.rel (0) target = $region5
  $region4: #{_classifier_forward_impl.1} parent=0 // pred_region
    _
  $region5: #{_classifier_forward_impl.1} parent=0 // pred_fallthru
    _
  // Predicated region
  $region6: #{_classifier_forward_impl.1} parent=0 // pred_check
    _
  $region7: #{_classifier_forward_impl.1} parent=0 // pred_check_branch
    %16 = sbr.rel (0) target = $region9
  $region8: #{_classifier_forward_impl.1} parent=0 // pred_region
    _
  $region9: #{_classifier_forward_impl.1} parent=0 // pred_fallthru
    _
  // Predicated region
  $region10: #{_classifier_forward_impl.1} parent=0 // pred_check
    _
  $region11: #{_classifier_forward_impl.1} parent=0 // pred_check_branch
    %18 = sbr.rel (0) target = $region13
  $region12: #{_classifier_forward_impl.1} parent=0 // pred_region
    _
  $region13: #{_classifier_forward_impl.1} parent=0 // pred_fallthru
    _
  // Predicated region
  $region14: #{_classifier_forward_impl.1} parent=0 // pred_check
    _
  $region15: #{_classifier_forward_impl.1} parent=0 // pred_check_branch
    %20 = sbr.rel (0) target = $region17
  $region16: #{_classifier_forward_impl.1} parent=0 // pred_region
    _
  $region17: #{_classifier_forward_impl.1} parent=0 // pred_fallthru
    _
  // Predicated region
  $region18: #{_classifier_forward_impl.1} parent=0 // pred_check
    _
  $region19: #{_classifier_forward_impl.1} parent=0 // pred_check_branch
    %22 = sbr.rel (0) target = $region21
  $region20: #{_classifier_forward_impl.1} parent=0 // pred_region
    _
  $region21: #{_classifier_forward_impl.1} parent=0 // pred_fallthru
    _
  %v24 = vld [vmem:[%s0] sm:$0xff]
  %v25 = vld [vmem:[%s0 + $0x8] sm:$0xff]
  %v26 = vpack.c.bf16 %v25, %v24
  %v27 = vld [vmem:[%s1] sm:$0xf]
  %v28 = vld [vmem:[%s1 + $0x4] sm:$0xf]
  %v29 = vld [vmem:[%s1 + $0x8] sm:$0xf]
  %v30 = vld [vmem:[%s1 + $0xc] sm:$0xf]
  %v31 = vld [vmem:[%s2] sm:$0x1]
  %v32 = vld [vmem:[%s3] sm:$0xff]
  %v33 = vld [vmem:[%s3 + $0x8] sm:$0xff]
  %v34 = vld [vmem:[%s4] sm:$0x1]
  %v36 = vlaneseq
  %v37 = vshrl.u32 %v36, 7
  %v38 = vsub.s32 0, %v37
  %v39 = vrot.slane %v31, %v38
  %v45 = vunpack.c.l.b16 %v27
  %v46 = vunpack.c.l.b16 %v28
  %v47 = vunpack.c.l.b16 %v29
  %v48 = vunpack.c.l.b16 %v30
  %v49 = vpack.c.b16 %v46, %v45
  %v50 = vpack.c.b16 %v48, %v47
  %vm53 = vcmask 261120
  %v55 = vsel %vm53, %v26, 0
  %57 = vmatprep.subr.bf16.mxu0 0
  %58 = vmatpush1.bf16.msra.mxu0 %v49
  %59 = vmatprep.subr.bf16.mxu0 0
  %60 = vmatpush1.bf16.msra.mxu0 %v50
  %61 = vmatprep.subr.bf16.mxu0 0
  %62 = vmatpush1.bf16.msra.mxu0 0
  %63 = vmatprep.subr.bf16.mxu0 0
  %64 = vmatpush1.bf16.msra.mxu0 0
  %65 = vmatprep.subr.bf16.mxu0 0
  %66 = vmatpush1.bf16.msra.mxu0 0
  %67 = vmatprep.subr.bf16.mxu0 0
  %68 = vmatpush1.bf16.msra.mxu0 0
  %69 = vmatprep.subr.bf16.mxu0 0
  %70 = vmatpush1.bf16.msra.mxu0 0
  %71 = vmatprep.subr.bf16.mxu0 0
  %72 = vmatpush1.bf16.msra.mxu0 0
  %73 = vmatprep.subr.bf16.mxu0 0
  %74 = vmatpush1.bf16.msra.mxu0 0
  %75 = vmatprep.subr.bf16.mxu0 0
  %76 = vmatpush1.bf16.msra.mxu0 0
  %77 = vmatprep.subr.bf16.mxu0 0
  %78 = vmatpush1.bf16.msra.mxu0 0
  %79 = vmatprep.subr.bf16.mxu0 0
  %80 = vmatpush1.bf16.msra.mxu0 0
  %81 = vmatprep.subr.bf16.mxu0 0
  %82 = vmatpush1.bf16.msra.mxu0 0
  %83 = vmatprep.subr.bf16.mxu0 0
  %84 = vmatpush1.bf16.msra.mxu0 0
  %85 = vmatprep.subr.bf16.mxu0 0
  %86 = vmatpush1.bf16.msra.mxu0 0
  %87 = vmatprep.subr.bf16.mxu0 0
  %88 = vmatpush1.bf16.msra.mxu0 0
  %89 = vmatprep.mubr.bf16.mxu0 0
  %90 = vmatmul.mubr.bf16.gmra.mrb[0].mxu0 %v55
  %v91 = vpop.f32.mrb[0].mxu0
  %v92 = vadd.f32 %v39, %v91
  %v93 = vpop.f32.mrb[0].mxu0
  %v94 = vpop.f32.mrb[0].mxu0
  %v95 = vadd.f32 %v39, %v94
  %v96 = vpop.f32.mrb[0].mxu0
  %97 = vdwg.mxu0
  %98 = vst [vmem:[%s5] sm:$0xff] %v92
  %99 = vst [vmem:[%s5 + $0x8] sm:$0xff] %v95
  %v100 = vlaneseq
  %v101 = vand.u32 %v100, 127
  %102 = vmax.xlane.f32.xlu0 %v92
  %v103 = vpop.xlane.xlu0 %102
  %104 = vmax.xlane.f32.xlu0 %v95
  %v105 = vpop.xlane.xlu0 %104
  %vm106 = vcmp.eq.f32.partialorder %v92, %v103
  %vm107 = vcmp.eq.f32.partialorder %v95, %v105
  %v108 = vsel %vm106, %v101, 128
  %v109 = vsel %vm107, %v101, 128
  %v110 = vand.u32 %v108, 65535
  %v111 = vshra.s32 %v108, 16
  %v112 = vcvt.s32.f32 %v110
  %v113 = vcvt.s32.f32 %v111
  %114 = vmin.xlane.f32.xlu0 %v113
  %v115 = vpop.xlane.xlu0 %114
  %vm116 = vcmp.eq.f32.partialorder %v113, %v115
  %v117 = vsel %vm116, %v112, inf
  %118 = vmin.xlane.f32.xlu0 %v117
  %v119 = vpop.xlane.xlu0 %118
  %v120 = vcvt.f32.s32 %v119
  %v121 = vcvt.f32.s32 %v115
  %v122 = vshll.u32 %v121, 16
  %v123 = vadd.s32 %v122, %v120
  %v124 = vand.u32 %v109, 65535
  %v125 = vshra.s32 %v109, 16
  %v126 = vcvt.s32.f32 %v124
  %v127 = vcvt.s32.f32 %v125
  %128 = vmin.xlane.f32.xlu0 %v127
  %v129 = vpop.xlane.xlu0 %128
  %vm130 = vcmp.eq.f32.partialorder %v127, %v129
  %v131 = vsel %vm130, %v126, inf
  %132 = vmin.xlane.f32.xlu0 %v131
  %v133 = vpop.xlane.xlu0 %132
  %v134 = vcvt.f32.s32 %v133
  %v135 = vcvt.f32.s32 %v129
  %v136 = vshll.u32 %v135, 16
  %v137 = vadd.s32 %v136, %v134
  %vm138 = vcmask 7168
  %139 = vst.msk [vmem:[%s6] sm:$0xff] %vm138, %v123
  %140 = vst.msk [vmem:[%s6 + $0x8] sm:$0xff] %vm138, %v137
  %v141 = vsub.f32 %v92, %v103
  %v142 = vsub.f32 %v95, %v105
  %143 = vset.pattern.permute.xlu0 0
  %144 = vperm.xlu0 %143, %v32
  %v145 = vpop.permute.xlu0 %144
  %146 = vset.pattern.permute.xlu0 0
  %147 = vperm.xlu0 %146, %v33
  %v148 = vpop.permute.xlu0 %147
  %vm149 = vcmp.eq.s32.totalorder %v101, %v145
  %vm150 = vcmp.eq.s32.totalorder %v101, %v148
  %v151 = vsel %vm149, %v141, 0.0
  %v152 = vsel %vm150, %v142, 0.0
  %153 = vadd.xlane.f32.xlu0 %v151
  %v154 = vpop.xlane.xlu0 %153
  %155 = vadd.xlane.f32.xlu0 %v152
  %v156 = vpop.xlane.xlu0 %155
  %v158 = vlaneseq
  %v159 = vshrl.u32 %v158, 7
  %v160 = vsub.s32 0, %v159
  %v161 = vrot.slane %v34, %v160
  %v163 = vsel %vm149, %v161, 0.0
  %v164 = vsel %vm150, %v161, 0.0
  %165 = vadd.xlane.f32.xlu0 %v163
  %v166 = vpop.xlane.xlu0 %165
  %167 = vadd.xlane.f32.xlu0 %v164
  %v168 = vpop.xlane.xlu0 %167
  %v169 = vpack.c.bf16 %v142, %v141
  %v171 = vmul.bf16 %v169, 1069105081
  %v172 = vpow.bf16.pop %v171
  %v173 = vunpack.c.l.bf16 %v172
  %v174 = vunpack.c.h.bf16 %v172
  %175 = vadd.xlane.f32.xlu0 %v173
  %v176 = vpop.xlane.xlu0 %175
  %177 = vadd.xlane.f32.xlu0 %v174
  %v178 = vpop.xlane.xlu0 %177
  %v179 = vlog2.pop %v176
  %v180 = vmul.f32 %v179, 0.6931472
  %v181 = vlog2.pop %v178
  %v182 = vmul.f32 %v181, 0.6931472
  %v183 = vsub.f32 %v180, %v154
  %v184 = vsub.f32 %v182, %v156
  %v185 = vmul.f32 %v166, %v183
  %v186 = vmul.f32 %v168, %v184
  %v187 = vsel %vm138, %v185, 0.0
  %v188 = vsel %vm138, %v186, 0.0
  %v189 = vadd.f32 %v187, %v188
  %190 = vadd.xlane.f32.xlu0 %v189
  %v191 = vpop.xlane.xlu0 %190
  %v192 = vrot.slane %v191, 4
  %v193 = vadd.f32 %v191, %v192
  %v194 = vrot.slane %v193, 2
  %v195 = vadd.f32 %v193, %v194
  %v196 = vrot.slane %v195, 1
  %v197 = vadd.f32 %v195, %v196
  %s198 = vtos %v197
  %v199 = vsel %vm138, %v166, 0.0
  %v200 = vsel %vm138, %v168, 0.0
  %v201 = vadd.f32 %v199, %v200
  %202 = vadd.xlane.f32.xlu0 %v201
  %v203 = vpop.xlane.xlu0 %202
  %v204 = vrot.slane %v203, 4
  %v205 = vadd.f32 %v203, %v204
  %v206 = vrot.slane %v205, 2
  %v207 = vadd.f32 %v205, %v206
  %v208 = vrot.slane %v207, 1
  %v209 = vadd.f32 %v207, %v208
  %s210 = vtos %v209
  %v211 = vlaneseq
  %v212 = vshrl.u32 %v211, 7
  %vm213 = vcmp.eq.s32.totalorder %v212, 0
  %vm214 = vcmp.eq.s32.totalorder %v212, 1
  %v215 = vstv %s210
  %v216 = vsel %vm214, %v215, 0.0
  %v217 = vstv %s198
  %v218 = vsel %vm213, %v217, %v216
  %219 = vst [vmem:[%s7] sm:$0xff] %v218
  // Predicated region
  $region22: #{_classifier_forward_impl.1} parent=0 // pred_check
    _
  $region23: #{_classifier_forward_impl.1} parent=0 // pred_check_branch
    %221 = sbr.rel (0) target = $region25
  $region24: #{_classifier_forward_impl.1} parent=0 // pred_region
    _
  $region25: #{_classifier_forward_impl.1} parent=0 // pred_fallthru
    _
  // Predicated region
  $region26: #{_classifier_forward_impl.1} parent=0 // pred_check
    _
  $region27: #{_classifier_forward_impl.1} parent=0 // pred_check_branch
    %223 = sbr.rel (0) target = $region29
  $region28: #{_classifier_forward_impl.1} parent=0 // pred_region
    _
  $region29: #{_classifier_forward_impl.1} parent=0 // pred_fallthru
    _
  // Predicated region
  $region30: #{_classifier_forward_impl.1} parent=0 // pred_check
    _
  $region31: #{_classifier_forward_impl.1} parent=0 // pred_check_branch
    %225 = sbr.rel (0) target = $region33
  $region32: #{_classifier_forward_impl.1} parent=0 // pred_region
    _
  $region33: #{_classifier_forward_impl.1} parent=0 // pred_fallthru
    _
  // Predicated region
  $region34: #{_classifier_forward_impl.1} parent=0 // pred_check
    _
  $region35: #{_classifier_forward_impl.1} parent=0 // pred_check_branch
    %227 = sbr.rel (0) target = $region37
  $region36: #{_classifier_forward_impl.1} parent=0 // pred_region
    _
  $region37: #{_classifier_forward_impl.1} parent=0 // pred_fallthru
    _
  // Predicated region
  $region38: #{_classifier_forward_impl.1} parent=0 // pred_check
    _
  $region39: #{_classifier_forward_impl.1} parent=0 // pred_check_branch
    %229 = sbr.rel (0) target = $region41
  $region40: #{_classifier_forward_impl.1} parent=0 // pred_region
    _
  $region41: #{_classifier_forward_impl.1} parent=0 // pred_fallthru
    _
  // Predicated region
  $region42: #{_classifier_forward_impl.1} parent=0 // pred_check
    _
  $region43: #{_classifier_forward_impl.1} parent=0 // pred_check_branch
    %231 = sbr.rel (0) target = $region45
  $region44: #{_classifier_forward_impl.1} parent=0 // pred_region
    _
  $region45: #{_classifier_forward_impl.1} parent=0 // pred_fallthru
    _

</llo_original>
